<compile_context>
chip_gen: v7x
topology: tpu7x:2x2x1
jax: 0.10.0
libtpu: 0.0.40
codegen_flags: <defaults>
</compile_context>

<pallas_src>
import functools
import math

import jax
import jax.numpy as jnp
from jax.experimental import pallas as pl
from jax.experimental.pallas import tpu as pltpu


def _round_up(x, m):
    return ((x + m - 1) // m) * m


def _gnn_kernel(num_coeffs, num_nodes, v_ref, s_ref, cheby_ref, bh_ref,
                wo_ref, bo_ref, out_ref, vhid_ref):
    """One row-tile of the GNN forward.

    v_ref    : (TILE_N, Fp)      zero-padded vertex features (row tile)
    s_ref    : (1, Fp)           column sum of the *unpadded* V
    cheby_ref: (num_coeffs, Fp)  chebyshev coefficients (already :F-sliced, padded)
    bh_ref   : (1, Fp)           hidden bias (already :F-sliced, padded)
    wo_ref   : (Fp, Op)          output projection (already :F-sliced rows, padded)
    bo_ref   : (1, Op)           output bias (padded)
    out_ref  : (TILE_N, Op)      output tile (lane-dense store)
    vhid_ref : (TILE_N, Fp)      hidden vertex features tile (lane-dense store)
    """
    inv_c = 1.0 / (2.0 + 0.1 * (num_nodes - 1))   # column/row sum of unnormalized E

    V = v_ref[...]
    s = s_ref[...]                                # (1, Fp), broadcasts over rows
    coeffs = cheby_ref[...]                       # (num_coeffs, Fp)

    def apply_E(x, m):
        # E @ x, given colsum(x) == m * s  (m is a Python float folded at trace time).
        return ((0.1 * m) * inv_c) * s + (1.9 * inv_c) * x

    # T0 = D = E.T @ V = E @ V (E is symmetric); colsum(T0) = colsum(V) = s.
    t_prev = apply_E(V, 1.0)
    m_prev = 1.0
    t_prev2 = None
    m_prev2 = None
    acc = coeffs[0:1, :] * t_prev                 # running cheby_out accumulator

    for k in range(1, num_coeffs):                # static trip count (Python int)
        t_new = 2.0 * apply_E(t_prev, m_prev)
        m_new = 2.0 * m_prev
        if t_prev2 is not None:                   # torch quirk: 2nd term has no "- T_{k-2}"
            t_new = t_new - t_prev2
            m_new = m_new - m_prev2
        acc = acc + coeffs[k:k + 1, :] * t_new
        t_prev2, m_prev2 = t_prev, m_prev
        t_prev, m_prev = t_new, m_new

    v_hidden = acc + bh_ref[...]
    vhid_ref[...] = v_hidden

    out_ref[...] = jnp.dot(v_hidden, wo_ref[...],
                           preferred_element_type=jnp.float32) + bo_ref[...]


def gnn_forward(vertex_matrix, edge_matrix, params, num_coeffs):
    N, F = vertex_matrix.shape
    assert edge_matrix.shape[0] == N, "edge_matrix.size(0) must match num nodes"
    hidden = params["cheby_coeffs"].shape[-1]
    out_dim = params["W_output"].shape[-1]

    LANES = 128
    Fp = _round_up(F, LANES)
    Op = _round_up(out_dim, LANES)

    V = vertex_matrix.astype(jnp.float32)

    # Host-side :F slicing (columns F..H of these params are dead weight, exactly
    # as in the torch forward) and lane-dense zero padding.
    coeffs = params["cheby_coeffs"].reshape(num_coeffs, hidden)[:, :F].astype(jnp.float32)
    bh = params["bias_hidden"][:F].astype(jnp.float32)
    wo = params["W_output"][:F, :].astype(jnp.float32)
    bo = params["bias_output"].astype(jnp.float32)

    tile_n = min(_round_up(N, 8), 256)
    n_pad = _round_up(N, tile_n)
    grid = (n_pad // tile_n,)

    v_p = jnp.zeros((n_pad, Fp), jnp.float32).at[:N, :F].set(V)
    # Column sum of the real (unpadded) V; the rank-1 form of E only ever needs
    # this plus each row itself, which is what makes row-tiling legal.
    s_p = jnp.zeros((1, Fp), jnp.float32).at[:, :F].set(
        jnp.sum(V, axis=0, keepdims=True))
    coeffs_p = jnp.zeros((num_coeffs, Fp), jnp.float32).at[:, :F].set(coeffs)
    bh_p = jnp.zeros((1, Fp), jnp.float32).at[0, :F].set(bh)
    wo_p = jnp.zeros((Fp, Op), jnp.float32).at[:F, :out_dim].set(wo)
    bo_p = jnp.zeros((1, Op), jnp.float32).at[0, :out_dim].set(bo)

    kernel = functools.partial(_gnn_kernel, num_coeffs, N)

    out_p, vhid_p = pl.pallas_call(
        kernel,
        out_shape=(
            jax.ShapeDtypeStruct((n_pad, Op), jnp.float32),
            jax.ShapeDtypeStruct((n_pad, Fp), jnp.float32),
        ),
        grid=grid,
        in_specs=[
            pl.BlockSpec((tile_n, Fp), lambda i: (i, 0)),       # V row tile
            pl.BlockSpec((1, Fp), lambda i: (0, 0)),            # colsum(V)
            pl.BlockSpec((num_coeffs, Fp), lambda i: (0, 0)),   # cheby coeffs
            pl.BlockSpec((1, Fp), lambda i: (0, 0)),            # bias_hidden
            pl.BlockSpec((Fp, Op), lambda i: (0, 0)),           # W_output
            pl.BlockSpec((1, Op), lambda i: (0, 0)),            # bias_output
        ],
        out_specs=(
            pl.BlockSpec((tile_n, Op), lambda i: (i, 0)),
            pl.BlockSpec((tile_n, Fp), lambda i: (i, 0)),
        ),
        compiler_params=pltpu.CompilerParams(
            dimension_semantics=("parallel",)),
    )(v_p, s_p, coeffs_p, bh_p, wo_p, bo_p)

    # Slice padded lanes / rows back off (padded lanes are exactly zero by construction).
    return out_p[:N, :out_dim], vhid_p[:N, :F]


def init_params(key, input_dim, hidden_dim, output_dim):
    """Deterministic synthetic init mirroring reset_parameters()."""
    ks = jax.random.split(key, 6)

    def xavier(k, shape):
        bound = math.sqrt(6.0 / (shape[0] + shape[1]))
        return jax.random.uniform(k, shape, jnp.float32, -bound, bound)

    num_coeffs = min(2, hidden_dim // 2)
    params = dict(
        W=xavier(ks[0], (input_dim, hidden_dim)),          # unused in forward
        W_self=xavier(ks[1], (input_dim, hidden_dim)),     # unused in forward
        W_output=xavier(ks[2], (hidden_dim, output_dim)),
        cheby_coeffs=jax.random.uniform(
            ks[3], (num_coeffs, 1, hidden_dim), jnp.float32, -1.0, 1.0),
        bias_hidden=0.1 * jax.random.normal(ks[4], (hidden_dim,), jnp.float32),
        bias_output=0.1 * jax.random.normal(ks[5], (output_dim,), jnp.float32),
        identity=jnp.eye(input_dim, dtype=jnp.float32),    # unused in forward
    )
    return params, num_coeffs


def reference_forward(V, edge_matrix, params, num_coeffs):
    """Plain-JAX reference mirroring the PyTorch forward exactly (dense E)."""
    hi = jax.lax.Precision.HIGHEST
    N = edge_matrix.shape[0]
    eye = jnp.eye(N, dtype=jnp.float32)
    E = jnp.where(eye.astype(bool), jnp.ones((N, N), jnp.float32),
                  0.1 * jnp.ones((N, N), jnp.float32))
    E = E + eye
    E = E / E.sum(axis=0, keepdims=True)
    D = jnp.matmul(E.T, V, precision=hi)
    chebys = [D]
    for _ in range(1, num_coeffs):
        nxt = 2.0 * jnp.matmul(E, chebys[-1], precision=hi)
        if len(chebys) >= 2:
            nxt = nxt - chebys[-2]
        chebys.append(nxt)
    coeffs = params["cheby_coeffs"].reshape(num_coeffs, -1)
    F = V.shape[1]
    cheby_out = jnp.zeros_like(D)
    for k in range(num_coeffs):
        cheby_out = cheby_out + coeffs[k, :F][None, :] * chebys[k]
    Vh = cheby_out + params["bias_hidden"][:F][None, :]
    out = (jnp.matmul(Vh, params["W_output"][:F, :], precision=hi)
           + params["bias_output"][None, :])
    return out, Vh


if __name__ == "__main__":
    key = jax.random.PRNGKey(0)
    k_params, k_vertex, k_edge = jax.random.split(key, 3)

    input_dim, hidden_dim, output_dim = 8, 32, 8
    num_nodes = 16

    params, num_coeffs = init_params(k_params, input_dim, hidden_dim, output_dim)
    vertex_matrix = jax.random.normal(k_vertex, (num_nodes, input_dim), jnp.float32)
    # edge_matrix values are unused by forward (only its leading size), same as torch.
    edge_matrix = jax.random.normal(k_edge, (num_nodes, num_nodes), jnp.float32)

    out, v_hidden = gnn_forward(vertex_matrix, edge_matrix, params, num_coeffs)
    jax.block_until_ready((out, v_hidden))

    ref_out, ref_vh = reference_forward(vertex_matrix, edge_matrix, params, num_coeffs)
    assert out.shape == (num_nodes, output_dim)
    assert v_hidden.shape == (num_nodes, input_dim)
    # v_hidden exercises all of the graph/Chebyshev math and is pure f32 VPU work
    # in the kernel -> tight tolerance vs. the HIGHEST-precision XLA reference.
    assert jnp.allclose(v_hidden, ref_vh, atol=1e-5, rtol=1e-5), "hidden mismatch"
    # out adds a single dense projection through the MXU; slightly looser tolerance
    # to allow for the MXU's default f32 contraction vs. the HIGHEST XLA reference.
    assert jnp.allclose(out, ref_out, atol=1e-2, rtol=1e-2), "output mismatch"

    print("KERNEL_OK")
</pallas_src>

<mosaic_0001>
module attributes {stable_mosaic.version = 11 : i64} {
  func.func @_gnn_kernel(%arg0: i32, %arg1: memref<16x128xf32, #tpu.memory_space<vmem>>, %arg2: memref<1x128xf32, #tpu.memory_space<vmem>>, %arg3: memref<2x128xf32, #tpu.memory_space<vmem>>, %arg4: memref<1x128xf32, #tpu.memory_space<vmem>>, %arg5: memref<128x128xf32, #tpu.memory_space<vmem>>, %arg6: memref<1x128xf32, #tpu.memory_space<vmem>>, %arg7: memref<16x128xf32, #tpu.memory_space<vmem>>, %arg8: memref<16x128xf32, #tpu.memory_space<vmem>>) attributes {dimension_semantics = [#tpu.dimension_semantics<parallel>], iteration_bounds = array<i64: 1>, scalar_prefetch = 0 : i64, scratch_operands = 0 : i64, tpu.core_type = #tpu.core_type<tc>, window_params = [{transform_indices = @transform_0, window_bounds = array<i64: 16, 128>}, {pipeline_mode = #tpu.pipeline_mode<synchronous>, transform_indices = @transform_1, window_bounds = array<i64: 1, 128>}, {pipeline_mode = #tpu.pipeline_mode<synchronous>, transform_indices = @transform_2, window_bounds = array<i64: 2, 128>}, {pipeline_mode = #tpu.pipeline_mode<synchronous>, transform_indices = @transform_3, window_bounds = array<i64: 1, 128>}, {pipeline_mode = #tpu.pipeline_mode<synchronous>, transform_indices = @transform_4, window_bounds = array<i64: 128, 128>}, {pipeline_mode = #tpu.pipeline_mode<synchronous>, transform_indices = @transform_5, window_bounds = array<i64: 1, 128>}, {transform_indices = @transform_6, window_bounds = array<i64: 16, 128>}, {transform_indices = @transform_7, window_bounds = array<i64: 16, 128>}]} {
    %c0 = arith.constant 0 : index
    %c0_0 = arith.constant 0 : index
    %0 = vector.load %arg1[%c0, %c0_0] : memref<16x128xf32, #tpu.memory_space<vmem>>, vector<16x128xf32>
    %c0_1 = arith.constant 0 : index
    %c0_2 = arith.constant 0 : index
    %1 = vector.load %arg2[%c0_1, %c0_2] : memref<1x128xf32, #tpu.memory_space<vmem>>, vector<1x128xf32>
    %c0_3 = arith.constant 0 : index
    %c0_4 = arith.constant 0 : index
    %2 = vector.load %arg3[%c0_3, %c0_4] : memref<2x128xf32, #tpu.memory_space<vmem>>, vector<2x128xf32>
    %cst = arith.constant 0.0285714287 : f32
    %3 = vector.broadcast %cst : f32 to vector<1x128xf32>
    %4 = arith.mulf %3, %1 : vector<1x128xf32>
    %cst_5 = arith.constant 0.54285717 : f32
    %5 = vector.broadcast %cst_5 : f32 to vector<16x128xf32>
    %6 = arith.mulf %5, %0 : vector<16x128xf32>
    %7 = vector.broadcast %4 : vector<1x128xf32> to vector<16x128xf32>
    %8 = arith.addf %7, %6 : vector<16x128xf32>
    %9 = vector.extract_strided_slice %2 {offsets = [0, 0], sizes = [1, 128], strides = [1, 1]} : vector<2x128xf32> to vector<1x128xf32>
    %10 = vector.broadcast %9 : vector<1x128xf32> to vector<16x128xf32>
    %11 = arith.mulf %10, %8 : vector<16x128xf32>
    %cst_6 = arith.constant 0.0285714287 : f32
    %12 = vector.broadcast %cst_6 : f32 to vector<1x128xf32>
    %13 = arith.mulf %12, %1 : vector<1x128xf32>
    %cst_7 = arith.constant 0.54285717 : f32
    %14 = vector.broadcast %cst_7 : f32 to vector<16x128xf32>
    %15 = arith.mulf %14, %8 : vector<16x128xf32>
    %16 = vector.broadcast %13 : vector<1x128xf32> to vector<16x128xf32>
    %17 = arith.addf %16, %15 : vector<16x128xf32>
    %cst_8 = arith.constant 2.000000e+00 : f32
    %18 = vector.broadcast %cst_8 : f32 to vector<16x128xf32>
    %19 = arith.mulf %18, %17 : vector<16x128xf32>
    %20 = vector.extract_strided_slice %2 {offsets = [1, 0], sizes = [1, 128], strides = [1, 1]} : vector<2x128xf32> to vector<1x128xf32>
    %21 = vector.broadcast %20 : vector<1x128xf32> to vector<16x128xf32>
    %22 = arith.mulf %21, %19 : vector<16x128xf32>
    %23 = arith.addf %11, %22 : vector<16x128xf32>
    %c0_9 = arith.constant 0 : index
    %c0_10 = arith.constant 0 : index
    %24 = vector.load %arg4[%c0_9, %c0_10] : memref<1x128xf32, #tpu.memory_space<vmem>>, vector<1x128xf32>
    %25 = vector.broadcast %24 : vector<1x128xf32> to vector<16x128xf32>
    %26 = arith.addf %23, %25 : vector<16x128xf32>
    %c0_11 = arith.constant 0 : index
    %c0_12 = arith.constant 0 : index
    %27 = vector.load %arg8[%c0_11, %c0_12] : memref<16x128xf32, #tpu.memory_space<vmem>>, vector<16x128xf32>
    tpu.vector_store %arg8[%c0_11, %c0_12], %26 {strides = array<i32>} : memref<16x128xf32, #tpu.memory_space<vmem>>, vector<16x128xf32>,
    %c0_13 = arith.constant 0 : index
    %c0_14 = arith.constant 0 : index
    %28 = vector.load %arg5[%c0_13, %c0_14] : memref<128x128xf32, #tpu.memory_space<vmem>>, vector<128x128xf32>
    %cst_15 = arith.constant dense<0.000000e+00> : vector<16x128xf32>
    %29 = tpu.matmul %26, %28, %cst_15 {dimension_numbers = #tpu.dot_dimension_numbers<[1], [0], [0], [1], [0, 0, 1, 1], [], []>} : vector<16x128xf32>, vector<128x128xf32>, vector<16x128xf32> -> vector<16x128xf32>
    %c0_16 = arith.constant 0 : index
    %c0_17 = arith.constant 0 : index
    %30 = vector.load %arg6[%c0_16, %c0_17] : memref<1x128xf32, #tpu.memory_space<vmem>>, vector<1x128xf32>
    %31 = vector.broadcast %30 : vector<1x128xf32> to vector<16x128xf32>
    %32 = arith.addf %29, %31 : vector<16x128xf32>
    %c0_18 = arith.constant 0 : index
    %c0_19 = arith.constant 0 : index
    %33 = vector.load %arg7[%c0_18, %c0_19] : memref<16x128xf32, #tpu.memory_space<vmem>>, vector<16x128xf32>
    tpu.vector_store %arg7[%c0_18, %c0_19], %32 {strides = array<i32>} : memref<16x128xf32, #tpu.memory_space<vmem>>, vector<16x128xf32>,
    return
  }
  func.func @transform_0(%arg0: i32) -> (i32, i32) {
    %c0_i32 = arith.constant 0 : i32
    %c0_i32_0 = arith.constant 0 : i32
    return %arg0, %c0_i32 : i32, i32
  }
  func.func @transform_1(%arg0: i32) -> (i32, i32) {
    %c0_i32 = arith.constant 0 : i32
    %c0_i32_0 = arith.constant 0 : i32
    %c0_i32_1 = arith.constant 0 : i32
    return %c0_i32, %c0_i32_0 : i32, i32
  }
  func.func @transform_2(%arg0: i32) -> (i32, i32) {
    %c0_i32 = arith.constant 0 : i32
    %c0_i32_0 = arith.constant 0 : i32
    %c0_i32_1 = arith.constant 0 : i32
    return %c0_i32, %c0_i32_0 : i32, i32
  }
  func.func @transform_3(%arg0: i32) -> (i32, i32) {
    %c0_i32 = arith.constant 0 : i32
    %c0_i32_0 = arith.constant 0 : i32
    %c0_i32_1 = arith.constant 0 : i32
    return %c0_i32, %c0_i32_0 : i32, i32
  }
  func.func @transform_4(%arg0: i32) -> (i32, i32) {
    %c0_i32 = arith.constant 0 : i32
    %c0_i32_0 = arith.constant 0 : i32
    %c0_i32_1 = arith.constant 0 : i32
    return %c0_i32, %c0_i32_0 : i32, i32
  }
  func.func @transform_5(%arg0: i32) -> (i32, i32) {
    %c0_i32 = arith.constant 0 : i32
    %c0_i32_0 = arith.constant 0 : i32
    %c0_i32_1 = arith.constant 0 : i32
    return %c0_i32, %c0_i32_0 : i32, i32
  }
  func.func @transform_6(%arg0: i32) -> (i32, i32) {
    %c0_i32 = arith.constant 0 : i32
    %c0_i32_0 = arith.constant 0 : i32
    return %arg0, %c0_i32 : i32, i32
  }
  func.func @transform_7(%arg0: i32) -> (i32, i32) {
    %c0_i32 = arith.constant 0 : i32
    %c0_i32_0 = arith.constant 0 : i32
    return %arg0, %c0_i32 : i32, i32
  }
}

</mosaic_0001>

<llo_original>
// kernel: tpu_custom_call.1
$region0: #{tpu_custom_call.1}
  #allocation0 [shape = 'u32[]', space=smem, size = 0x4, offset = 0x4, fixed_abs, tag = 'smem constant byte address 0x4 - core index']
  #allocation1 [shape = 'u32[144,128]{1,0:T(1,128)}', space=vmem, size = 0x12000, scoped, tag = 'internal scratch']
  %s0 = inlined_call_operand.hbm [shape: f32[16,128], index: 0, kind: input, shape index: {}]
  %s1 = inlined_call_operand.vmem [shape: f32[1,128], index: 1, kind: input, shape index: {}]
  %s2 = inlined_call_operand.vmem [shape: f32[2,128], index: 2, kind: input, shape index: {}]
  %s3 = inlined_call_operand.vmem [shape: f32[1,128], index: 3, kind: input, shape index: {}]
  %s4 = inlined_call_operand.hbm [shape: f32[128,128], index: 4, kind: input, shape index: {}]
  %s5 = inlined_call_operand.vmem [shape: f32[1,128], index: 5, kind: input, shape index: {}]
  %s6 = inlined_call_operand.hbm [shape: f32[16,128], index: 6, kind: output, shape index: {0}]
  %s7 = inlined_call_operand.hbm [shape: f32[16,128], index: 7, kind: output, shape index: {1}]
  %8 = xla_tuple %s6, %s7
  %s9 = sld [smem:[#allocation0]]
  $region50: #{tpu_custom_call.1} parent=0
    _
  %s11 = ssub.s32 1, %s9
  %s12 = scalar_select 0, %s11, %s9
  $region1: #{tpu_custom_call.1} parent=0
    #allocation2 [shape = 'u8[8192]{0}', space=vmem, size = 0x2000, scoped, tag = 'input window, operand 0, single buffered']
    #allocation3 [shape = 's32[1]{0}', space=sflag, size = 0x4, scoped, tag = 'scoped memory for tpu_custom_call.1']
    #allocation4 [shape = 's32[1]{0}', space=sflag, size = 0x4, scoped, tag = 'scoped memory for tpu_custom_call.1']
    #allocation5 [shape = 'u8[65536]{0}', space=vmem, size = 0x10000, scoped, tag = 'input window, operand 4, single buffered']
    #allocation6 [shape = 's32[1]{0}', space=sflag, size = 0x4, scoped, tag = 'scoped memory for tpu_custom_call.1']
    #allocation7 [shape = 'u8[8192]{0}', space=vmem, size = 0x2000, scoped, tag = 'output window, operand 0, single buffered']
    #allocation8 [shape = 'u8[8192]{0}', space=vmem, size = 0x2000, scoped, tag = 'output window, operand 1, single buffered']
    #allocation9 [shape = 's32[1]{0}', space=sflag, size = 0x4, scoped, tag = 'scoped memory for tpu_custom_call.1']
    %13 = vsyncpa [#allocation3], 0
    %14 = vsyncpa [#allocation6], 0
    %15 = vsyncpa [#allocation4], 0
    %16 = vsyncpa [#allocation9], 0
    // Predicated region
    $region2: #{tpu_custom_call.1} parent=1 // pred_check
      _
    $region3: #{tpu_custom_call.1} parent=1 // pred_check_branch
      %18 = sbr.rel (0) target = $region5
    $region4: #{tpu_custom_call.1} parent=1 // pred_region
      %s20 = ssub.s32 256, 256
      %21 = vsyncadd [#allocation3], %s20
      %s22 = sshll.u32 [#allocation2], 4
      %s23 = int_to_ptr.vmem [resolvable:$true] %s22
      %28 = dma.hbm_to_vmem [thread:$0]  %s0, 256, %s23, [#allocation3], 128, 128, 8
    $region5: #{tpu_custom_call.1} parent=1 // pred_fallthru
      _
    // Predicated region
    $region6: #{tpu_custom_call.1} parent=1 // pred_check
      _
    $region7: #{tpu_custom_call.1} parent=1 // pred_check_branch
      %30 = sbr.rel (0) target = $region9
    $region8: #{tpu_custom_call.1} parent=1 // pred_region
      _
    $region9: #{tpu_custom_call.1} parent=1 // pred_fallthru
      _
    // Predicated region
    $region10: #{tpu_custom_call.1} parent=1 // pred_check
      _
    $region11: #{tpu_custom_call.1} parent=1 // pred_check_branch
      %32 = sbr.rel (0) target = $region13
    $region12: #{tpu_custom_call.1} parent=1 // pred_region
      _
    $region13: #{tpu_custom_call.1} parent=1 // pred_fallthru
      _
    // Predicated region
    $region14: #{tpu_custom_call.1} parent=1 // pred_check
      _
    $region15: #{tpu_custom_call.1} parent=1 // pred_check_branch
      %34 = sbr.rel (0) target = $region17
    $region16: #{tpu_custom_call.1} parent=1 // pred_region
      _
    $region17: #{tpu_custom_call.1} parent=1 // pred_fallthru
      _
    // Predicated region
    $region18: #{tpu_custom_call.1} parent=1 // pred_check
      _
    $region19: #{tpu_custom_call.1} parent=1 // pred_check_branch
      %36 = sbr.rel (0) target = $region21
    $region20: #{tpu_custom_call.1} parent=1 // pred_region
      %s38 = ssub.s32 2048, 2048
      %39 = vsyncadd [#allocation6], %s38
      %s40 = sshll.u32 [#allocation5], 4
      %s41 = int_to_ptr.vmem [resolvable:$true] %s40
      %46 = dma.hbm_to_vmem [thread:$0]  %s4, 2048, %s41, [#allocation6], 128, 128, 8
    $region21: #{tpu_custom_call.1} parent=1 // pred_fallthru
      _
    // Predicated region
    $region22: #{tpu_custom_call.1} parent=1 // pred_check
      _
    $region23: #{tpu_custom_call.1} parent=1 // pred_check_branch
      %48 = sbr.rel (0) target = $region25
    $region24: #{tpu_custom_call.1} parent=1 // pred_region
      _
    $region25: #{tpu_custom_call.1} parent=1 // pred_fallthru
      _
    // Predicated region
    $region26: #{tpu_custom_call.1} parent=1 // pred_check
      _
    $region27: #{tpu_custom_call.1} parent=1 // pred_check_branch
      %50 = sbr.rel (0) target = $region29
    $region28: #{tpu_custom_call.1} parent=1 // pred_region
      %51 = dma.done [#allocation3], 256
    $region29: #{tpu_custom_call.1} parent=1 // pred_fallthru
      _
    // Predicated region
    $region30: #{tpu_custom_call.1} parent=1 // pred_check
      _
    $region31: #{tpu_custom_call.1} parent=1 // pred_check_branch
      %53 = sbr.rel (0) target = $region33
    $region32: #{tpu_custom_call.1} parent=1 // pred_region
      %54 = dma.done [#allocation6], 2048
    $region33: #{tpu_custom_call.1} parent=1 // pred_fallthru
      _
    %v55 = vld [vmem:[#allocation2] sm:$0xff]
    %v56 = vld [vmem:[#allocation2 + $0x8] sm:$0xff]
    %v57 = vld [vmem:[%s1] sm:$0x1]
    %v58 = vld [vmem:[%s2] sm:$0x3]
    %v59 = vmul.f32 %v57, 0.028571429
    %v60 = vmul.f32 %v55, 0.54285717
    %v61 = vmul.f32 %v56, 0.54285717
    %v63 = vlaneseq
    %v64 = vshrl.u32 %v63, 7
    %v65 = vsub.s32 0, %v64
    %v66 = vrot.slane %v59, %v65
    %v68 = vadd.f32 %v66, %v60
    %v69 = vadd.f32 %v66, %v61
    %v70 = vlaneseq
    %v71 = vshrl.u32 %v70, 7
    %v72 = vsub.s32 0, %v71
    %v73 = vrot.slane %v58, %v72
    %v74 = vmul.f32 %v73, %v68
    %v75 = vmul.f32 %v73, %v69
    %v76 = vmul.f32 %v68, 0.54285717
    %v77 = vmul.f32 %v69, 0.54285717
    %v78 = vadd.f32 %v66, %v76
    %v79 = vadd.f32 %v66, %v77
    %v80 = vmul.f32 %v78, 2.0
    %v81 = vmul.f32 %v79, 2.0
    %v82 = vlaneseq
    %v83 = vshrl.u32 %v82, 7
    %v84 = vsub.s32 1, %v83
    %v85 = vrot.slane %v58, %v84
    %v86 = vmul.f32 %v85, %v80
    %v87 = vmul.f32 %v85, %v81
    %v88 = vadd.f32 %v74, %v86
    %v89 = vadd.f32 %v75, %v87
    %v90 = vld [vmem:[%s3] sm:$0x1]
    %v92 = vlaneseq
    %v93 = vshrl.u32 %v92, 7
    %v94 = vsub.s32 0, %v93
    %v95 = vrot.slane %v90, %v94
    %v97 = vadd.f32 %v88, %v95
    %v98 = vadd.f32 %v89, %v95
    %99 = vst [vmem:[#allocation8] sm:$0xff] %v97
    %100 = vst [vmem:[#allocation8 + $0x8] sm:$0xff] %v98
    %v101 = vld [vmem:[#allocation5] sm:$0xff]
    %v102 = vld [vmem:[#allocation5 + $0x8] sm:$0xff]
    %v103 = vld [vmem:[#allocation5 + $0x10] sm:$0xff]
    %v104 = vld [vmem:[#allocation5 + $0x18] sm:$0xff]
    %v105 = vld [vmem:[#allocation5 + $0x20] sm:$0xff]
    %v106 = vld [vmem:[#allocation5 + $0x28] sm:$0xff]
    %v107 = vld [vmem:[#allocation5 + $0x30] sm:$0xff]
    %v108 = vld [vmem:[#allocation5 + $0x38] sm:$0xff]
    %v109 = vld [vmem:[#allocation5 + $0x40] sm:$0xff]
    %v110 = vld [vmem:[#allocation5 + $0x48] sm:$0xff]
    %v111 = vld [vmem:[#allocation5 + $0x50] sm:$0xff]
    %v112 = vld [vmem:[#allocation5 + $0x58] sm:$0xff]
    %v113 = vld [vmem:[#allocation5 + $0x60] sm:$0xff]
    %v114 = vld [vmem:[#allocation5 + $0x68] sm:$0xff]
    %v115 = vld [vmem:[#allocation5 + $0x70] sm:$0xff]
    %v116 = vld [vmem:[#allocation5 + $0x78] sm:$0xff]
    %v117 = vld [vmem:[%s5] sm:$0x1]
    %v119 = vlaneseq
    %v120 = vshrl.u32 %v119, 7
    %v121 = vsub.s32 0, %v120
    %v122 = vrot.slane %v117, %v121
    %124 = vmatprep.subr.mxu0 0.0
    %125 = vmatpush1.msra.mxu0 %v101
    %126 = vmatprep.subr.mxu0 0.0
    %127 = vmatpush1.msra.mxu0 %v102
    %128 = vmatprep.subr.mxu0 0.0
    %129 = vmatpush1.msra.mxu0 %v103
    %130 = vmatprep.subr.mxu0 0.0
    %131 = vmatpush1.msra.mxu0 %v104
    %132 = vmatprep.subr.mxu0 0.0
    %133 = vmatpush1.msra.mxu0 %v105
    %134 = vmatprep.subr.mxu0 0.0
    %135 = vmatpush1.msra.mxu0 %v106
    %136 = vmatprep.subr.mxu0 0.0
    %137 = vmatpush1.msra.mxu0 %v107
    %138 = vmatprep.subr.mxu0 0.0
    %139 = vmatpush1.msra.mxu0 %v108
    %140 = vmatprep.subr.mxu0 0.0
    %141 = vmatpush1.msra.mxu0 %v109
    %142 = vmatprep.subr.mxu0 0.0
    %143 = vmatpush1.msra.mxu0 %v110
    %144 = vmatprep.subr.mxu0 0.0
    %145 = vmatpush1.msra.mxu0 %v111
    %146 = vmatprep.subr.mxu0 0.0
    %147 = vmatpush1.msra.mxu0 %v112
    %148 = vmatprep.subr.mxu0 0.0
    %149 = vmatpush1.msra.mxu0 %v113
    %150 = vmatprep.subr.mxu0 0.0
    %151 = vmatpush1.msra.mxu0 %v114
    %152 = vmatprep.subr.mxu0 0.0
    %153 = vmatpush1.msra.mxu0 %v115
    %154 = vmatprep.subr.mxu0 0.0
    %155 = vmatpush1.msra.mxu0 %v116
    %156 = vmatprep.subr.mxu0 0.0
    %157 = vmatpush1.msra.mxu0 0.0
    %158 = vmatprep.subr.mxu0 0.0
    %159 = vmatpush1.msra.mxu0 0.0
    %160 = vmatprep.subr.mxu0 0.0
    %161 = vmatpush1.msra.mxu0 0.0
    %162 = vmatprep.subr.mxu0 0.0
    %163 = vmatpush1.msra.mxu0 0.0
    %164 = vmatprep.subr.mxu0 0.0
    %165 = vmatpush1.msra.mxu0 0.0
    %166 = vmatprep.subr.mxu0 0.0
    %167 = vmatpush1.msra.mxu0 0.0
    %168 = vmatprep.subr.mxu0 0.0
    %169 = vmatpush1.msra.mxu0 0.0
    %170 = vmatprep.subr.mxu0 0.0
    %171 = vmatpush1.msra.mxu0 0.0
    %172 = vmatprep.subr.mxu0 0.0
    %173 = vmatpush1.msra.mxu0 0.0
    %174 = vmatprep.subr.mxu0 0.0
    %175 = vmatpush1.msra.mxu0 0.0
    %176 = vmatprep.subr.mxu0 0.0
    %177 = vmatpush1.msra.mxu0 0.0
    %178 = vmatprep.subr.mxu0 0.0
    %179 = vmatpush1.msra.mxu0 0.0
    %180 = vmatprep.subr.mxu0 0.0
    %181 = vmatpush1.msra.mxu0 0.0
    %182 = vmatprep.subr.mxu0 0.0
    %183 = vmatpush1.msra.mxu0 0.0
    %184 = vmatprep.subr.mxu0 0.0
    %185 = vmatpush1.msra.mxu0 0.0
    %186 = vmatprep.subr.mxu0 0.0
    %187 = vmatpush1.msra.mxu0 0.0
    %188 = vmatprep.mubr.f32.mxu0 0.0
    %189 = vmatmul.mubr.f32.gmra.mrb[0].mxu0 %v97
    %v190 = vpop.f32.mrb[0].mxu0
    %v191 = vadd.f32 %v122, %v190
    %v192 = vpop.f32.mrb[0].mxu0
    %193 = vmatprep.mubr.f32.mxu0 0.0
    %194 = vmatmul.mubr.f32.gmra.mrb[0].mxu0 %v98
    %v195 = vpop.f32.mrb[0].mxu0
    %v196 = vadd.f32 %v122, %v195
    %v197 = vpop.f32.mrb[0].mxu0
    %198 = vdwg.mxu0
    %199 = vst [vmem:[#allocation7] sm:$0xff] %v191
    %200 = vst [vmem:[#allocation7 + $0x8] sm:$0xff] %v196
    // Predicated region
    $region34: #{tpu_custom_call.1} parent=1 // pred_check
      _
    $region35: #{tpu_custom_call.1} parent=1 // pred_check_branch
      %202 = sbr.rel (0) target = $region37
    $region36: #{tpu_custom_call.1} parent=1 // pred_region
      %s204 = ssub.s32 256, 256
      %205 = vsyncadd [#allocation4], %s204
      %s206 = sshll.u32 [#allocation7], 4
      %s207 = int_to_ptr.vmem [resolvable:$true] %s206
      %212 = dma.vmem_to_hbm [thread:$0]  %s207, 256, %s6, [#allocation4], 128, 128, 8
    $region37: #{tpu_custom_call.1} parent=1 // pred_fallthru
      _
    // Predicated region
    $region38: #{tpu_custom_call.1} parent=1 // pred_check
      _
    $region39: #{tpu_custom_call.1} parent=1 // pred_check_branch
      %214 = sbr.rel (0) target = $region41
    $region40: #{tpu_custom_call.1} parent=1 // pred_region
      %s216 = ssub.s32 256, 256
      %217 = vsyncadd [#allocation9], %s216
      %s218 = sshll.u32 [#allocation8], 4
      %s219 = int_to_ptr.vmem [resolvable:$true] %s218
      %224 = dma.vmem_to_hbm [thread:$0]  %s219, 256, %s7, [#allocation9], 128, 128, 8
    $region41: #{tpu_custom_call.1} parent=1 // pred_fallthru
      _
    // Predicated region
    $region42: #{tpu_custom_call.1} parent=1 // pred_check
      _
    $region43: #{tpu_custom_call.1} parent=1 // pred_check_branch
      %226 = sbr.rel (0) target = $region45
    $region44: #{tpu_custom_call.1} parent=1 // pred_region
      %227 = dma.done [#allocation4], 256
    $region45: #{tpu_custom_call.1} parent=1 // pred_fallthru
      _
    // Predicated region
    $region46: #{tpu_custom_call.1} parent=1 // pred_check
      _
    $region47: #{tpu_custom_call.1} parent=1 // pred_check_branch
      %229 = sbr.rel (0) target = $region49
    $region48: #{tpu_custom_call.1} parent=1 // pred_region
      %230 = dma.done [#allocation9], 256
    $region49: #{tpu_custom_call.1} parent=1 // pred_fallthru
      _
    %231 = vsyncpa [#allocation3], 1
    %232 = vsyncpa [#allocation6], 1
    %233 = vsyncpa [#allocation4], 1
    %234 = vsyncpa [#allocation9], 1

</llo_original>
